<compile_context>
chip_gen: v7x
topology: tpu7x:2x2x1
jax: 0.10.0
libtpu: 0.0.40
codegen_flags: <defaults>
</compile_context>

<pallas_src>
import functools

import jax
import jax.numpy as jnp
from jax.experimental import pallas as pl
from jax.experimental.pallas import tpu as pltpu


def _round_up(x, m):
    return -(-x // m) * m


def _base_conv_kernel(x_hbm, w_ref, mask_ref, scale_ref, bias_ref, o_ref,
                      x_vmem, dma_sem, *,
                      K, W, TL, TILE_IN, n_tiles, apply_scale, apply_relu):
    """One (image n, spatial tile t) grid step.

    x_hbm    : (N, Cin, L_in)  bf16 HBM ref (pl.ANY) - flat, halo-padded image
    w_ref    : (K, K, Cout, Cin) bf16  pure conv weights (BN NOT folded in)
    mask_ref : (K, TL) f32   per-kw W-boundary validity mask for this tile
    scale_ref: (Cout, 1) f32 folded BN scale (gamma/sqrt(var+eps))
    bias_ref : (Cout, 1) f32 folded bias ((conv_bias-mean)*scale+beta)
    o_ref    : (1, Cout, TL) lane-dense output block
    x_vmem   : (2, Cin, TILE_IN) VMEM scratch  (manual double buffer)
    dma_sem  : (2,) DMA semaphores
    """
    pad = K // 2
    n = pl.program_id(0)
    t = pl.program_id(1)
    slot = t % 2

    def tile_copy(tile_idx, s):
        return pltpu.make_async_copy(
            x_hbm.at[n, :, pl.ds(tile_idx * TL, TILE_IN)],
            x_vmem.at[s],
            dma_sem.at[s])

    # Prime the pipeline at the start of every image row of the grid.
    @pl.when(t == 0)
    def _():
        tile_copy(t, slot).start()

    # Prefetch the next spatial tile into the other slot; the spatial grid
    # axis is "arbitrary" (sequential), so this hand-rolled double buffer is
    # well ordered and the DMA overlaps this tile's compute.
    if n_tiles > 1:
        @pl.when(t + 1 < n_tiles)
        def _():
            tile_copy(t + 1, (t + 1) % 2).start()

    tile_copy(t, slot).wait()

    # kw-outer / kh-inner tap loop.  Masking output columns commutes with the
    # left matmul, so the W-boundary mask is applied once per kw on the f32
    # partial instead of on every bf16 input patch.
    # TODO(synk): for tiny Cin, stack the K*K shifted patches (im2col) and do
    # one deep-contraction matmul per tile to raise MXU utilization further.
    acc = None
    for kw in range(K):
        acc_kw = None
        for kh in range(K):
            patch = x_vmem[slot, :, pl.ds(kh * W + kw, TL)]       # (Cin, TL)
            d = jnp.dot(w_ref[kh, kw], patch,
                        preferred_element_type=jnp.float32)       # (Cout, TL)
            acc_kw = d if acc_kw is None else acc_kw + d
        if kw != pad:                     # centre tap never crosses an edge
            acc_kw = acc_kw * mask_ref[pl.ds(kw, 1), :]
        acc = acc_kw if acc is None else acc + acc_kw

    # TODO(synk): for production Cout/Cin, add a parallel Cout-tile axis and a
    # trailing "arbitrary" Cin-reduction axis with a VMEM f32 accumulator (P3)
    # instead of this in-register accumulator.
    y = acc
    if apply_scale:
        y = y * scale_ref[...]            # BN scale stays in f32 (accuracy)
    y = y + bias_ref[...]
    if apply_relu:
        y = jnp.maximum(y, 0.0)
    o_ref[0] = y.astype(o_ref.dtype)


def base_conv_pallas(x, weight, conv_bias=None, *, stride=1,
                     use_bn=False, bn_gamma=None, bn_beta=None,
                     bn_mean=None, bn_var=None, activation="relu",
                     eps=1e-5, compute_dtype=jnp.bfloat16, out_dtype=None,
                     max_tile_lanes=2048, vmem_budget_bytes=40 * 2**20):
    """Forward pass of BaseConv.

    x      : (N, Cin, H, W) float32 (PyTorch NCHW layout)
    weight : (Cout, Cin, K, K)
    returns: (N, Cout, Hout, Wout), matching nn.Conv2d(pad=K//2) (+BN)(+ReLU).
    """
    N, Cin, H, W = x.shape
    Cout, Cin_w, KH, KW = weight.shape
    assert Cin_w == Cin and KH == KW
    K = KH
    assert K % 2 == 1, "even kernel sizes not supported"  # TODO(synk): even K
    assert activation in (None, "relu")  # TODO(synk): only ReLU/None fused
    pad = K // 2
    if out_dtype is None:
        out_dtype = x.dtype     # pass jnp.bfloat16 to halve output HBM traffic

    L_out = H * W
    halo = (K - 1) * W + (K - 1)          # extra lanes a tile's taps reach

    # ---- spatial (lane) tile selection under an explicit VMEM budget -------
    c_isz = jnp.dtype(compute_dtype).itemsize
    o_isz = jnp.dtype(out_dtype).itemsize

    def vmem_need(tl):
        tile_in = tl + _round_up(halo, 128)
        return (2 * Cin * tile_in * c_isz                 # x double buffer
                + 2 * K * K * Cout * max(Cin, 128) * c_isz  # weights (padded)
                + 2 * K * tl * 4                          # mask
                + 4 * Cout * 128 * 4                      # scale / bias
                + 2 * Cout * tl * o_isz)                  # output block

    TL = L_out                            # fallback: single full-width tile
    if L_out % 128 == 0:
        for cand in (2048, 1024, 512, 256, 128):
            if (cand <= max_tile_lanes and L_out % cand == 0
                    and vmem_need(cand) <= vmem_budget_bytes):
                TL = cand
                break
    n_tiles = L_out // TL
    TILE_IN = TL + _round_up(halo, 128)
    L_in = L_out + _round_up(halo, 128)   # >= last tile's DMA window end

    # ---- flat, halo-padded activation buffer: ONE fused cast+pad pass ------
    # Padding H by `pad` rows == padding the flat H*W axis by pad*W, so the
    # whole halo (top/bottom rows + lane head/tail) is a single jnp.pad on the
    # flattened axis.  No transpose, no Cin padding in HBM.
    head = pad * W + pad
    tail = L_in - head - L_out
    x_buf = jnp.pad(x.reshape(N, Cin, L_out).astype(compute_dtype),
                    ((0, 0), (0, 0), (head, tail)))

    # ---- weights / BN folding (scale kept in f32, NOT baked into bf16) -----
    w_t = jnp.transpose(weight, (2, 3, 0, 1)).astype(compute_dtype)  # (K,K,Co,Ci)
    if conv_bias is None:
        conv_bias = jnp.zeros((Cout,), jnp.float32)
    if use_bn:
        # TODO(synk): training-mode (Synchronized) batch statistics not modeled.
        scale = (bn_gamma / jnp.sqrt(bn_var + eps)).astype(jnp.float32)
        bias = ((conv_bias - bn_mean) * scale + bn_beta).astype(jnp.float32)
    else:
        scale = jnp.ones((Cout,), jnp.float32)
        bias = conv_bias.astype(jnp.float32)
    scale2 = scale.reshape(Cout, 1)
    bias2 = bias.reshape(Cout, 1)

    # ---- per-kw validity masks for the W (column) boundary (f32) -----------
    col = jnp.arange(L_out, dtype=jnp.int32) % W
    kwi = jnp.arange(K, dtype=jnp.int32)
    mask = ((col[None, :] >= (pad - kwi)[:, None]) &
            (col[None, :] < (W + pad - kwi)[:, None])).astype(jnp.float32)

    kernel = functools.partial(
        _base_conv_kernel, K=K, W=W, TL=TL, TILE_IN=TILE_IN, n_tiles=n_tiles,
        apply_scale=use_bn, apply_relu=(activation == "relu"))

    vmem_limit = int(min(max(2 * vmem_need(TL), 16 * 2**20), 110 * 2**20))

    out_flat = pl.pallas_call(
        kernel,
        out_shape=jax.ShapeDtypeStruct((N, Cout, L_out), out_dtype),
        grid_spec=pltpu.PrefetchScalarGridSpec(
            num_scalar_prefetch=0,
            grid=(N, n_tiles),
            in_specs=[
                pl.BlockSpec(memory_space=pl.ANY),            # activations: HBM
                pl.BlockSpec((K, K, Cout, Cin), lambda n, t: (0, 0, 0, 0)),
                pl.BlockSpec((K, TL), lambda n, t: (0, t)),
                pl.BlockSpec((Cout, 1), lambda n, t: (0, 0)),
                pl.BlockSpec((Cout, 1), lambda n, t: (0, 0)),
            ],
            out_specs=pl.BlockSpec((1, Cout, TL), lambda n, t: (n, 0, t)),
            scratch_shapes=[
                pltpu.VMEM((2, Cin, TILE_IN), compute_dtype),
                pltpu.SemaphoreType.DMA((2,)),
            ]),
        compiler_params=pltpu.CompilerParams(
            # N axis shards across megacore TCs; the spatial axis must stay
            # "arbitrary" (sequential) for the hand-rolled double buffer.
            # TODO(synk): add a parallel Cout-tile axis when N*n_tiles is
            # small (v7x 2-TC utilization).
            dimension_semantics=("parallel", "arbitrary"),
            vmem_limit_bytes=vmem_limit),
    )(x_buf, w_t, mask, scale2, bias2)

    out = out_flat.reshape(N, Cout, H, W)
    if stride > 1:
        # TODO(synk): compute the strided output directly in the kernel
        # (as written this wastes stride^2 x MXU work and output HBM traffic).
        out = out[:, :, ::stride, ::stride]
    return out


def _reference(x, weight, conv_bias, *, stride, use_bn, gamma, beta, mean,
               var, relu, eps=1e-5):
    pad = weight.shape[-1] // 2
    y = jax.lax.conv_general_dilated(
        x, weight, window_strides=(stride, stride),
        padding=[(pad, pad), (pad, pad)],
        dimension_numbers=("NCHW", "OIHW", "NCHW"))
    y = y + conv_bias[None, :, None, None]
    if use_bn:
        s = (gamma / jnp.sqrt(var + eps))[None, :, None, None]
        y = (y - mean[None, :, None, None]) * s + beta[None, :, None, None]
    if relu:
        y = jnp.maximum(y, 0.0)
    return y


if __name__ == "__main__":
    in_channels, out_channels, kernel_size = 4, 8, 3
    N, H, W = 2, 16, 16

    key = jax.random.PRNGKey(0)
    k1, k2, k3, k4, k5, k6 = jax.random.split(key, 6)

    x = jax.random.normal(k1, (N, in_channels, H, W), dtype=jnp.float32)
    # conv.weight.data.normal_(0, 0.01); conv.bias.data.zero_()
    weight = 0.01 * jax.random.normal(
        k2, (out_channels, in_channels, kernel_size, kernel_size), jnp.float32)
    conv_bias = jnp.zeros((out_channels,), jnp.float32)
    # BN affine init ~ (1, 0) with non-trivial running stats so the folded
    # scale/bias path is actually exercised.
    gamma = 1.0 + 0.1 * jax.random.normal(k3, (out_channels,), jnp.float32)
    beta = 0.05 * jax.random.normal(k4, (out_channels,), jnp.float32)
    running_mean = 0.05 * jax.random.normal(k5, (out_channels,), jnp.float32)
    running_var = 1.0 + 0.1 * jax.random.uniform(k6, (out_channels,),
                                                 jnp.float32)

    def check(out, ref, tag, atol=5e-3, rtol=5e-2):
        assert out.shape == ref.shape, (tag, out.shape, ref.shape)
        out32 = out.astype(jnp.float32)
        err = float(jnp.max(jnp.abs(out32 - ref)))
        assert jnp.allclose(out32, ref, atol=atol, rtol=rtol), (tag, err)

    ref_bn = _reference(x, weight, conv_bias, stride=1, use_bn=True,
                        gamma=gamma, beta=beta, mean=running_mean,
                        var=running_var, relu=True)

    # Config A: BN + ReLU, default (largest) spatial tile -> single tile here.
    out_a = base_conv_pallas(x, weight, conv_bias, use_bn=True,
                             bn_gamma=gamma, bn_beta=beta, bn_mean=running_mean,
                             bn_var=running_var, activation="relu")
    out_a = jax.block_until_ready(out_a)
    check(out_a, ref_bn, "bn_relu_single_tile")

    # Config B: same op with 128-lane tiles -> exercises the halo window and
    # the manual double-buffered DMA path (2 spatial tiles per image).
    out_b = base_conv_pallas(x, weight, conv_bias, use_bn=True,
                             bn_gamma=gamma, bn_beta=beta, bn_mean=running_mean,
                             bn_var=running_var, activation="relu",
                             max_tile_lanes=128)
    out_b = jax.block_until_ready(out_b)
    check(out_b, ref_bn, "bn_relu_halo_tiled")

    # Config C: plain conv (+bias), no BN / activation, bf16 output.
    out_c = base_conv_pallas(x, weight, conv_bias, use_bn=False,
                             activation=None, out_dtype=jnp.bfloat16)
    out_c = jax.block_until_ready(out_c)
    ref_c = _reference(x, weight, conv_bias, stride=1, use_bn=False,
                       gamma=None, beta=None, mean=None, var=None, relu=False)
    check(out_c, ref_c, "conv_only_bf16_out", atol=1e-2)

    print("KERNEL_OK")
</pallas_src>

<mosaic_0001>
module attributes {stable_mosaic.version = 11 : i64} {
  func.func @_base_conv_kernel(%arg0: i32, %arg1: i32, %arg2: memref<2x4x384xbf16, #tpu.memory_space<any>>, %arg3: memref<3x3x8x4xbf16, #tpu.memory_space<vmem>>, %arg4: memref<3x256xf32, #tpu.memory_space<vmem>>, %arg5: memref<8x1xf32, #tpu.memory_space<vmem>>, %arg6: memref<8x1xf32, #tpu.memory_space<vmem>>, %arg7: memref<1x8x256xf32, #tpu.memory_space<vmem>>, %arg8: memref<2x4x384xbf16, #tpu.memory_space<vmem>>, %arg9: memref<2x!tpu.dma_semaphore, #tpu.memory_space<semaphore_mem>>) attributes {dimension_semantics = [#tpu.dimension_semantics<parallel>, #tpu.dimension_semantics<arbitrary>], iteration_bounds = array<i64: 2, 1>, scalar_prefetch = 0 : i64, scratch_operands = 2 : i64, tpu.core_type = #tpu.core_type<tc>, window_params = [{}, {pipeline_mode = #tpu.pipeline_mode<synchronous>, transform_indices = @transform_1, window_bounds = array<i64: 3, 3, 8, 4>}, {transform_indices = @transform_2, window_bounds = array<i64: 3, 256>}, {pipeline_mode = #tpu.pipeline_mode<synchronous>, transform_indices = @transform_3, window_bounds = array<i64: 8, 1>}, {pipeline_mode = #tpu.pipeline_mode<synchronous>, transform_indices = @transform_4, window_bounds = array<i64: 8, 1>}, {transform_indices = @transform_5, window_bounds = array<i64: 1, 8, 256>}]} {
    %c2_i32 = arith.constant 2 : i32
    %c0_i32 = arith.constant 0 : i32
    %0 = arith.cmpi eq, %c2_i32, %c0_i32 : i32
    %c1_i32 = arith.constant 1 : i32
    %1 = arith.select %0, %c1_i32, %c2_i32 : i32
    %2 = arith.remsi %arg1, %1 : i32
    %c0_i32_0 = arith.constant 0 : i32
    %3 = arith.cmpi ne, %2, %c0_i32_0 : i32
    %c0_i32_1 = arith.constant 0 : i32
    %4 = arith.cmpi slt, %2, %c0_i32_1 : i32
    %c0_i32_2 = arith.constant 0 : i32
    %5 = arith.cmpi slt, %1, %c0_i32_2 : i32
    %6 = arith.xori %4, %5 : i1
    %7 = arith.andi %6, %3 : i1
    %8 = arith.addi %2, %1 : i32
    %9 = arith.select %7, %8, %2 : i32
    %c0_i32_3 = arith.constant 0 : i32
    %10 = arith.cmpi eq, %arg1, %c0_i32_3 : i32
    %11 = arith.extui %10 : i1 to i32
    %c0_i32_4 = arith.constant 0 : i32
    %12 = arith.cmpi ne, %11, %c0_i32_4 : i32
    scf.if %12 {
      %c256_i32_73 = arith.constant 256 : i32
      %99 = arith.muli %arg1, %c256_i32_73 : i32
      %c0_i32_74 = arith.constant 0 : i32
      %100 = tpu.memref_slice %arg2[%arg0, %c0_i32_74, %99] : memref<2x4x384xbf16, #tpu.memory_space<any>> -> memref<1x4x384xbf16, #tpu.memory_space<any>>
      %101 = tpu.memref_squeeze %100 : memref<1x4x384xbf16, #tpu.memory_space<any>> -> memref<4x384xbf16, #tpu.memory_space<any>>
      %c0_i32_75 = arith.constant 0 : i32
      %c0_i32_76 = arith.constant 0 : i32
      %102 = tpu.memref_slice %arg8[%9, %c0_i32_75, %c0_i32_76] : memref<2x4x384xbf16, #tpu.memory_space<vmem>> -> memref<1x4x384xbf16, #tpu.memory_space<vmem>>
      %103 = tpu.memref_squeeze %102 : memref<1x4x384xbf16, #tpu.memory_space<vmem>> -> memref<4x384xbf16, #tpu.memory_space<vmem>>
      %104 = tpu.memref_slice %arg9[%9] : memref<2x!tpu.dma_semaphore, #tpu.memory_space<semaphore_mem>> -> memref<1x!tpu.dma_semaphore, #tpu.memory_space<semaphore_mem>>
      %105 = tpu.memref_squeeze %104 : memref<1x!tpu.dma_semaphore, #tpu.memory_space<semaphore_mem>> -> memref<!tpu.dma_semaphore, #tpu.memory_space<semaphore_mem>>
      tpu.enqueue_dma source(%101 : memref<4x384xbf16, #tpu.memory_space<any>>) target(%103 : memref<4x384xbf16, #tpu.memory_space<vmem>>) target_semaphore(%105 : memref<!tpu.dma_semaphore, #tpu.memory_space<semaphore_mem>>)
    } else {
    }
    %c256_i32 = arith.constant 256 : i32
    %13 = arith.muli %arg1, %c256_i32 : i32
    %c0_i32_5 = arith.constant 0 : i32
    %14 = tpu.memref_slice %arg2[%arg0, %c0_i32_5, %13] : memref<2x4x384xbf16, #tpu.memory_space<any>> -> memref<1x4x384xbf16, #tpu.memory_space<any>>
    %15 = tpu.memref_squeeze %14 : memref<1x4x384xbf16, #tpu.memory_space<any>> -> memref<4x384xbf16, #tpu.memory_space<any>>
    %c0_i32_6 = arith.constant 0 : i32
    %c0_i32_7 = arith.constant 0 : i32
    %16 = tpu.memref_slice %arg8[%9, %c0_i32_6, %c0_i32_7] : memref<2x4x384xbf16, #tpu.memory_space<vmem>> -> memref<1x4x384xbf16, #tpu.memory_space<vmem>>
    %17 = tpu.memref_squeeze %16 : memref<1x4x384xbf16, #tpu.memory_space<vmem>> -> memref<4x384xbf16, #tpu.memory_space<vmem>>
    %18 = tpu.memref_slice %arg9[%9] : memref<2x!tpu.dma_semaphore, #tpu.memory_space<semaphore_mem>> -> memref<1x!tpu.dma_semaphore, #tpu.memory_space<semaphore_mem>>
    %19 = tpu.memref_squeeze %18 : memref<1x!tpu.dma_semaphore, #tpu.memory_space<semaphore_mem>> -> memref<!tpu.dma_semaphore, #tpu.memory_space<semaphore_mem>>
    tpu.wait_dma2 semaphore(%19 : memref<!tpu.dma_semaphore, #tpu.memory_space<semaphore_mem>>) src(%15 : memref<4x384xbf16, #tpu.memory_space<any>>) dst(%17 : memref<4x384xbf16, #tpu.memory_space<vmem>>)
    %20 = arith.index_cast %9 : i32 to index
    %c0 = arith.constant 0 : index
    %c0_8 = arith.constant 0 : index
    %21 = vector.load %arg8[%20, %c0, %c0_8] : memref<2x4x384xbf16, #tpu.memory_space<vmem>>, vector<1x4x256xbf16>
    %22 = vector.shape_cast %21 : vector<1x4x256xbf16> to vector<4x256xbf16>
    %c0_9 = arith.constant 0 : index
    %c0_10 = arith.constant 0 : index
    %c0_11 = arith.constant 0 : index
    %c0_12 = arith.constant 0 : index
    %23 = vector.load %arg3[%c0_9, %c0_10, %c0_11, %c0_12] : memref<3x3x8x4xbf16, #tpu.memory_space<vmem>>, vector<1x1x8x4xbf16>
    %24 = vector.shape_cast %23 : vector<1x1x8x4xbf16> to vector<8x4xbf16>
    %cst = arith.constant dense<0.000000e+00> : vector<8x256xf32>
    %25 = tpu.matmul %24, %22, %cst {dimension_numbers = #tpu.dot_dimension_numbers<[1], [0], [0], [1], [0, 0, 1, 1], [], []>} : vector<8x4xbf16>, vector<4x256xbf16>, vector<8x256xf32> -> vector<8x256xf32>
    %26 = arith.index_cast %9 : i32 to index
    %c0_13 = arith.constant 0 : index
    %c16 = arith.constant 16 : index
    %27 = vector.load %arg8[%26, %c0_13, %c16] : memref<2x4x384xbf16, #tpu.memory_space<vmem>>, vector<1x4x256xbf16>
    %28 = vector.shape_cast %27 : vector<1x4x256xbf16> to vector<4x256xbf16>
    %c1 = arith.constant 1 : index
    %c0_14 = arith.constant 0 : index
    %c0_15 = arith.constant 0 : index
    %c0_16 = arith.constant 0 : index
    %29 = vector.load %arg3[%c1, %c0_14, %c0_15, %c0_16] : memref<3x3x8x4xbf16, #tpu.memory_space<vmem>>, vector<1x1x8x4xbf16>
    %30 = vector.shape_cast %29 : vector<1x1x8x4xbf16> to vector<8x4xbf16>
    %cst_17 = arith.constant dense<0.000000e+00> : vector<8x256xf32>
    %31 = tpu.matmul %30, %28, %cst_17 {dimension_numbers = #tpu.dot_dimension_numbers<[1], [0], [0], [1], [0, 0, 1, 1], [], []>} : vector<8x4xbf16>, vector<4x256xbf16>, vector<8x256xf32> -> vector<8x256xf32>
    %32 = arith.addf %25, %31 : vector<8x256xf32>
    %33 = arith.index_cast %9 : i32 to index
    %c0_18 = arith.constant 0 : index
    %c32 = arith.constant 32 : index
    %34 = vector.load %arg8[%33, %c0_18, %c32] : memref<2x4x384xbf16, #tpu.memory_space<vmem>>, vector<1x4x256xbf16>
    %35 = vector.shape_cast %34 : vector<1x4x256xbf16> to vector<4x256xbf16>
    %c2 = arith.constant 2 : index
    %c0_19 = arith.constant 0 : index
    %c0_20 = arith.constant 0 : index
    %c0_21 = arith.constant 0 : index
    %36 = vector.load %arg3[%c2, %c0_19, %c0_20, %c0_21] : memref<3x3x8x4xbf16, #tpu.memory_space<vmem>>, vector<1x1x8x4xbf16>
    %37 = vector.shape_cast %36 : vector<1x1x8x4xbf16> to vector<8x4xbf16>
    %cst_22 = arith.constant dense<0.000000e+00> : vector<8x256xf32>
    %38 = tpu.matmul %37, %35, %cst_22 {dimension_numbers = #tpu.dot_dimension_numbers<[1], [0], [0], [1], [0, 0, 1, 1], [], []>} : vector<8x4xbf16>, vector<4x256xbf16>, vector<8x256xf32> -> vector<8x256xf32>
    %39 = arith.addf %32, %38 : vector<8x256xf32>
    %c0_23 = arith.constant 0 : index
    %c0_24 = arith.constant 0 : index
    %40 = vector.load %arg4[%c0_23, %c0_24] : memref<3x256xf32, #tpu.memory_space<vmem>>, vector<1x256xf32>
    %41 = vector.broadcast %40 : vector<1x256xf32> to vector<8x256xf32>
    %42 = arith.mulf %39, %41 : vector<8x256xf32>
    %43 = arith.index_cast %9 : i32 to index
    %c0_25 = arith.constant 0 : index
    %c1_26 = arith.constant 1 : index
    %44 = vector.load %arg8[%43, %c0_25, %c1_26] : memref<2x4x384xbf16, #tpu.memory_space<vmem>>, vector<1x4x256xbf16>
    %45 = vector.shape_cast %44 : vector<1x4x256xbf16> to vector<4x256xbf16>
    %c0_27 = arith.constant 0 : index
    %c1_28 = arith.constant 1 : index
    %c0_29 = arith.constant 0 : index
    %c0_30 = arith.constant 0 : index
    %46 = vector.load %arg3[%c0_27, %c1_28, %c0_29, %c0_30] : memref<3x3x8x4xbf16, #tpu.memory_space<vmem>>, vector<1x1x8x4xbf16>
    %47 = vector.shape_cast %46 : vector<1x1x8x4xbf16> to vector<8x4xbf16>
    %cst_31 = arith.constant dense<0.000000e+00> : vector<8x256xf32>
    %48 = tpu.matmul %47, %45, %cst_31 {dimension_numbers = #tpu.dot_dimension_numbers<[1], [0], [0], [1], [0, 0, 1, 1], [], []>} : vector<8x4xbf16>, vector<4x256xbf16>, vector<8x256xf32> -> vector<8x256xf32>
    %49 = arith.index_cast %9 : i32 to index
    %c0_32 = arith.constant 0 : index
    %c17 = arith.constant 17 : index
    %50 = vector.load %arg8[%49, %c0_32, %c17] : memref<2x4x384xbf16, #tpu.memory_space<vmem>>, vector<1x4x256xbf16>
    %51 = vector.shape_cast %50 : vector<1x4x256xbf16> to vector<4x256xbf16>
    %c1_33 = arith.constant 1 : index
    %c1_34 = arith.constant 1 : index
    %c0_35 = arith.constant 0 : index
    %c0_36 = arith.constant 0 : index
    %52 = vector.load %arg3[%c1_33, %c1_34, %c0_35, %c0_36] : memref<3x3x8x4xbf16, #tpu.memory_space<vmem>>, vector<1x1x8x4xbf16>
    %53 = vector.shape_cast %52 : vector<1x1x8x4xbf16> to vector<8x4xbf16>
    %cst_37 = arith.constant dense<0.000000e+00> : vector<8x256xf32>
    %54 = tpu.matmul %53, %51, %cst_37 {dimension_numbers = #tpu.dot_dimension_numbers<[1], [0], [0], [1], [0, 0, 1, 1], [], []>} : vector<8x4xbf16>, vector<4x256xbf16>, vector<8x256xf32> -> vector<8x256xf32>
    %55 = arith.addf %48, %54 : vector<8x256xf32>
    %56 = arith.index_cast %9 : i32 to index
    %c0_38 = arith.constant 0 : index
    %c33 = arith.constant 33 : index
    %57 = vector.load %arg8[%56, %c0_38, %c33] : memref<2x4x384xbf16, #tpu.memory_space<vmem>>, vector<1x4x256xbf16>
    %58 = vector.shape_cast %57 : vector<1x4x256xbf16> to vector<4x256xbf16>
    %c2_39 = arith.constant 2 : index
    %c1_40 = arith.constant 1 : index
    %c0_41 = arith.constant 0 : index
    %c0_42 = arith.constant 0 : index
    %59 = vector.load %arg3[%c2_39, %c1_40, %c0_41, %c0_42] : memref<3x3x8x4xbf16, #tpu.memory_space<vmem>>, vector<1x1x8x4xbf16>
    %60 = vector.shape_cast %59 : vector<1x1x8x4xbf16> to vector<8x4xbf16>
    %cst_43 = arith.constant dense<0.000000e+00> : vector<8x256xf32>
    %61 = tpu.matmul %60, %58, %cst_43 {dimension_numbers = #tpu.dot_dimension_numbers<[1], [0], [0], [1], [0, 0, 1, 1], [], []>} : vector<8x4xbf16>, vector<4x256xbf16>, vector<8x256xf32> -> vector<8x256xf32>
    %62 = arith.addf %55, %61 : vector<8x256xf32>
    %63 = arith.addf %42, %62 : vector<8x256xf32>
    %64 = arith.index_cast %9 : i32 to index
    %c0_44 = arith.constant 0 : index
    %c2_45 = arith.constant 2 : index
    %65 = vector.load %arg8[%64, %c0_44, %c2_45] : memref<2x4x384xbf16, #tpu.memory_space<vmem>>, vector<1x4x256xbf16>
    %66 = vector.shape_cast %65 : vector<1x4x256xbf16> to vector<4x256xbf16>
    %c0_46 = arith.constant 0 : index
    %c2_47 = arith.constant 2 : index
    %c0_48 = arith.constant 0 : index
    %c0_49 = arith.constant 0 : index
    %67 = vector.load %arg3[%c0_46, %c2_47, %c0_48, %c0_49] : memref<3x3x8x4xbf16, #tpu.memory_space<vmem>>, vector<1x1x8x4xbf16>
    %68 = vector.shape_cast %67 : vector<1x1x8x4xbf16> to vector<8x4xbf16>
    %cst_50 = arith.constant dense<0.000000e+00> : vector<8x256xf32>
    %69 = tpu.matmul %68, %66, %cst_50 {dimension_numbers = #tpu.dot_dimension_numbers<[1], [0], [0], [1], [0, 0, 1, 1], [], []>} : vector<8x4xbf16>, vector<4x256xbf16>, vector<8x256xf32> -> vector<8x256xf32>
    %70 = arith.index_cast %9 : i32 to index
    %c0_51 = arith.constant 0 : index
    %c18 = arith.constant 18 : index
    %71 = vector.load %arg8[%70, %c0_51, %c18] : memref<2x4x384xbf16, #tpu.memory_space<vmem>>, vector<1x4x256xbf16>
    %72 = vector.shape_cast %71 : vector<1x4x256xbf16> to vector<4x256xbf16>
    %c1_52 = arith.constant 1 : index
    %c2_53 = arith.constant 2 : index
    %c0_54 = arith.constant 0 : index
    %c0_55 = arith.constant 0 : index
    %73 = vector.load %arg3[%c1_52, %c2_53, %c0_54, %c0_55] : memref<3x3x8x4xbf16, #tpu.memory_space<vmem>>, vector<1x1x8x4xbf16>
    %74 = vector.shape_cast %73 : vector<1x1x8x4xbf16> to vector<8x4xbf16>
    %cst_56 = arith.constant dense<0.000000e+00> : vector<8x256xf32>
    %75 = tpu.matmul %74, %72, %cst_56 {dimension_numbers = #tpu.dot_dimension_numbers<[1], [0], [0], [1], [0, 0, 1, 1], [], []>} : vector<8x4xbf16>, vector<4x256xbf16>, vector<8x256xf32> -> vector<8x256xf32>
    %76 = arith.addf %69, %75 : vector<8x256xf32>
    %77 = arith.index_cast %9 : i32 to index
    %c0_57 = arith.constant 0 : index
    %c34 = arith.constant 34 : index
    %78 = vector.load %arg8[%77, %c0_57, %c34] : memref<2x4x384xbf16, #tpu.memory_space<vmem>>, vector<1x4x256xbf16>
    %79 = vector.shape_cast %78 : vector<1x4x256xbf16> to vector<4x256xbf16>
    %c2_58 = arith.constant 2 : index
    %c2_59 = arith.constant 2 : index
    %c0_60 = arith.constant 0 : index
    %c0_61 = arith.constant 0 : index
    %80 = vector.load %arg3[%c2_58, %c2_59, %c0_60, %c0_61] : memref<3x3x8x4xbf16, #tpu.memory_space<vmem>>, vector<1x1x8x4xbf16>
    %81 = vector.shape_cast %80 : vector<1x1x8x4xbf16> to vector<8x4xbf16>
    %cst_62 = arith.constant dense<0.000000e+00> : vector<8x256xf32>
    %82 = tpu.matmul %81, %79, %cst_62 {dimension_numbers = #tpu.dot_dimension_numbers<[1], [0], [0], [1], [0, 0, 1, 1], [], []>} : vector<8x4xbf16>, vector<4x256xbf16>, vector<8x256xf32> -> vector<8x256xf32>
    %83 = arith.addf %76, %82 : vector<8x256xf32>
    %c2_63 = arith.constant 2 : index
    %c0_64 = arith.constant 0 : index
    %84 = vector.load %arg4[%c2_63, %c0_64] : memref<3x256xf32, #tpu.memory_space<vmem>>, vector<1x256xf32>
    %85 = vector.broadcast %84 : vector<1x256xf32> to vector<8x256xf32>
    %86 = arith.mulf %83, %85 : vector<8x256xf32>
    %87 = arith.addf %63, %86 : vector<8x256xf32>
    %c0_65 = arith.constant 0 : index
    %c0_66 = arith.constant 0 : index
    %88 = vector.load %arg5[%c0_65, %c0_66] : memref<8x1xf32, #tpu.memory_space<vmem>>, vector<8x1xf32>
    %89 = vector.broadcast %88 : vector<8x1xf32> to vector<8x256xf32>
    %90 = arith.mulf %87, %89 : vector<8x256xf32>
    %c0_67 = arith.constant 0 : index
    %c0_68 = arith.constant 0 : index
    %91 = vector.load %arg6[%c0_67, %c0_68] : memref<8x1xf32, #tpu.memory_space<vmem>>, vector<8x1xf32>
    %92 = vector.broadcast %91 : vector<8x1xf32> to vector<8x256xf32>
    %93 = arith.addf %90, %92 : vector<8x256xf32>
    %cst_69 = arith.constant 0.000000e+00 : f32
    %94 = vector.broadcast %cst_69 : f32 to vector<8x256xf32>
    %95 = arith.maximumf %93, %94 : vector<8x256xf32>
    %c0_70 = arith.constant 0 : index
    %c0_71 = arith.constant 0 : index
    %c0_72 = arith.constant 0 : index
    %96 = vector.load %arg7[%c0_70, %c0_71, %c0_72] : memref<1x8x256xf32, #tpu.memory_space<vmem>>, vector<1x8x256xf32>
    %97 = vector.shape_cast %96 : vector<1x8x256xf32> to vector<8x256xf32>
    %98 = vector.shape_cast %95 : vector<8x256xf32> to vector<1x8x256xf32>
    tpu.vector_store %arg7[%c0_70, %c0_71, %c0_72], %98 {strides = array<i32>} : memref<1x8x256xf32, #tpu.memory_space<vmem>>, vector<1x8x256xf32>,
    return
  }
  func.func @transform_1(%arg0: i32, %arg1: i32) -> (i32, i32, i32, i32) {
    %c0_i32 = arith.constant 0 : i32
    %c0_i32_0 = arith.constant 0 : i32
    %c0_i32_1 = arith.constant 0 : i32
    %c0_i32_2 = arith.constant 0 : i32
    %c0_i32_3 = arith.constant 0 : i32
    return %c0_i32, %c0_i32_0, %c0_i32_1, %c0_i32_2 : i32, i32, i32, i32
  }
  func.func @transform_2(%arg0: i32, %arg1: i32) -> (i32, i32) {
    %c0_i32 = arith.constant 0 : i32
    %c0_i32_0 = arith.constant 0 : i32
    return %c0_i32, %arg1 : i32, i32
  }
  func.func @transform_3(%arg0: i32, %arg1: i32) -> (i32, i32) {
    %c0_i32 = arith.constant 0 : i32
    %c0_i32_0 = arith.constant 0 : i32
    %c0_i32_1 = arith.constant 0 : i32
    return %c0_i32, %c0_i32_0 : i32, i32
  }
  func.func @transform_4(%arg0: i32, %arg1: i32) -> (i32, i32) {
    %c0_i32 = arith.constant 0 : i32
    %c0_i32_0 = arith.constant 0 : i32
    %c0_i32_1 = arith.constant 0 : i32
    return %c0_i32, %c0_i32_0 : i32, i32
  }
  func.func @transform_5(%arg0: i32, %arg1: i32) -> (i32, i32, i32) {
    %c0_i32 = arith.constant 0 : i32
    %c0_i32_0 = arith.constant 0 : i32
    return %arg0, %c0_i32, %arg1 : i32, i32, i32
  }
}

</mosaic_0001>

<llo_original>
// kernel: tpu_custom_call.1
$region0: #{tpu_custom_call.1}
  #allocation0 [shape = 'u32[]', space=smem, size = 0x4, offset = 0x4, fixed_abs, tag = 'smem constant byte address 0x4 - core index']
  #allocation1 [shape = 'u32[144,128]{1,0:T(1,128)}', space=vmem, size = 0x12000, scoped, tag = 'internal scratch']
  #allocation2 [shape = 'bf16[2,4,384]{2,1,0:T(4,128)(2,1)}', space=vmem, size = 0x1800, scoped, tag = 'scratch operand']
  #allocation3 [shape = 's32[2]{0}', space=sflag, size = 0x8, scoped, tag = 'scratch operand']
  #allocation6 [shape = 's32[]', space=sflag, size = 0x4, offset = 0, fixed_abs, tag = 'sflag constant byte address 0x0 - dummy sync flag']
  %s0 = inlined_call_operand.vmem [shape: bf16[2,4,384], index: 0, kind: input, shape index: {}]
  %s1 = inlined_call_operand.vmem [shape: bf16[3,3,8,4], index: 1, kind: input, shape index: {}]
  %s2 = inlined_call_operand.vmem [shape: f32[3,256], index: 2, kind: input, shape index: {}]
  %s3 = inlined_call_operand.vmem [shape: f32[8,1], index: 3, kind: input, shape index: {}]
  %s4 = inlined_call_operand.vmem [shape: f32[8,1], index: 4, kind: input, shape index: {}]
  %s5 = inlined_call_operand.hbm [shape: f32[2,8,256], index: 5, kind: output, shape index: {}]
  %s6 = sld [smem:[#allocation0]]
  $region83: #{tpu_custom_call.1} parent=0
    _
  %s8 = ssub.s32 1, %s6
  %s9 = scalar_select 0, %s8, %s6
  $region1: #{tpu_custom_call.1} parent=0
    #allocation4 [shape = 'u8[16384]{0}', space=vmem, size = 0x4000, scoped, tag = 'output window, operand 0']
    #allocation5 [shape = 's32[2]{0}', space=sflag, size = 0x8, scoped, tag = 'scoped memory for tpu_custom_call.1']
    %10 = vsyncpa [#allocation5], 0
    %s11 = scalar_lea.sflag [#allocation5], 1
    %12 = vsyncpa %s11, 0
    loop: start=0, step=1, limit=4
    $region2: #{tpu_custom_call.1} parent=1 // loop_pre_header
      _
    $region3: #{tpu_custom_call.1} parent=1 // loop_header
      %s14 = sphi 0, %s18
      %p15 = scmp.ge.s32.totalorder %s14, 4
      %s21 = sphi 0, %s33
      %s22 = sphi 0, %s29
      %s23 = sphi 0, %s21
      %s24 = sphi 0, %s22
      %s25 = sphi 0, %s23
      %s26 = sphi 0, %s24
      %s34 = sphi 0, %s34
      %s36 = sphi 0, %s34
      %s37 = sphi 0, %s36
      %s51 = sphi 0, %s37
      %s57 = sphi 0, %s59
      %s60 = sphi 0, %s57
      %s61 = sphi 0, %s60
      %s77 = sphi 0, %s61
      %s81 = sphi 0, %s81
      %s83 = sphi 0, %s81
      %s84 = sphi 0, %s83
      %s98 = sphi 0, %s84
      %s102 = sphi 0, %s102
      %s104 = sphi 0, %s102
      %s105 = sphi 0, %s104
      %s119 = sphi 0, %s105
      %s127 = sphi 0, %s129
      %s130 = sphi 0, %s127
      %s131 = sphi 0, %s130
      %s147 = sphi 0, %s131
    $region4: #{tpu_custom_call.1} parent=1 // loop_header_branch
      %17 = sbr.rel (%p15) target = $region8
    $region5: #{tpu_custom_call.1} parent=1 // loop_body
      %s19 = ssub.s32 %s14, 1
      %s20 = ssub.s32 %s14, 2
      %s27 = sadd.s32 1, %s22
      %p28 = scmp.ge.s32.totalorder %s27, 1
      %s29 = scalar_select %p28, 0, %s27
      %s30 = sadd.s32 1, %s21
      %s31 = scalar_select %p28, %s30, %s21
      %p32 = scmp.ge.s32.totalorder %s31, 2
      %s33 = scalar_select %p32, 0, %s31
      %s35 = sadd.s32 %s34, 1
      %p38 = scmp.eq.s32.totalorder %s14, 1
      %p39 = scmp.ne.s32.totalorder %s34, %s36
      %p40 = scmp.eq.s32.totalorder %s14, 0
      %p41 = por %p39, %p40
      %p42 = scmp.ne.s32.totalorder %s34, %s36
      %p43 = scmp.eq.s32.totalorder %s19, 1
      %p44 = por %p42, %p43
      %p45 = scmp.ne.s32.totalorder %s36, %s37
      %p46 = scmp.eq.s32.totalorder %s19, 0
      %p47 = por %p45, %p46
      %p48 = scmp.ne.s32.totalorder %s36, %s37
      %p49 = scmp.eq.s32.totalorder %s20, 1
      %p50 = por %p48, %p49
      %p52 = scmp.ne.s32.totalorder %s37, %s51
      %p53 = scmp.eq.s32.totalorder %s20, 0
      %p54 = por %p52, %p53
      %s55 = ssub.s32 %s22, %s29
      %p56 = scmp.eq.s32.totalorder %s55, 0
      %s58 = sadd.s32 %s57, 1
      %s59 = scalar_select %p56, %s57, %s58
      %p62 = pneg %p56
      %p63 = scmp.eq.s32.totalorder %s14, 1
      %p64 = por %p62, %p63
      %p65 = scmp.ne.s32.totalorder %s57, %s60
      %p66 = scmp.eq.s32.totalorder %s14, 0
      %p67 = por %p65, %p66
      %p68 = scmp.ne.s32.totalorder %s57, %s60
      %p69 = scmp.eq.s32.totalorder %s19, 1
      %p70 = por %p68, %p69
      %p71 = scmp.ne.s32.totalorder %s60, %s61
      %p72 = scmp.eq.s32.totalorder %s19, 0
      %p73 = por %p71, %p72
      %p74 = scmp.ne.s32.totalorder %s60, %s61
      %p75 = scmp.eq.s32.totalorder %s20, 1
      %p76 = por %p74, %p75
      %p78 = scmp.ne.s32.totalorder %s61, %s77
      %p79 = scmp.eq.s32.totalorder %s20, 0
      %p80 = por %p78, %p79
      %s82 = sadd.s32 %s81, 1
      %p85 = scmp.eq.s32.totalorder %s14, 1
      %p86 = scmp.ne.s32.totalorder %s81, %s83
      %p87 = scmp.eq.s32.totalorder %s14, 0
      %p88 = por %p86, %p87
      %p89 = scmp.ne.s32.totalorder %s81, %s83
      %p90 = scmp.eq.s32.totalorder %s19, 1
      %p91 = por %p89, %p90
      %p92 = scmp.ne.s32.totalorder %s83, %s84
      %p93 = scmp.eq.s32.totalorder %s19, 0
      %p94 = por %p92, %p93
      %p95 = scmp.ne.s32.totalorder %s83, %s84
      %p96 = scmp.eq.s32.totalorder %s20, 1
      %p97 = por %p95, %p96
      %p99 = scmp.ne.s32.totalorder %s84, %s98
      %p100 = scmp.eq.s32.totalorder %s20, 0
      %p101 = por %p99, %p100
      %s103 = sadd.s32 %s102, 1
      %p106 = scmp.eq.s32.totalorder %s14, 1
      %p107 = scmp.ne.s32.totalorder %s102, %s104
      %p108 = scmp.eq.s32.totalorder %s14, 0
      %p109 = por %p107, %p108
      %p110 = scmp.ne.s32.totalorder %s102, %s104
      %p111 = scmp.eq.s32.totalorder %s19, 1
      %p112 = por %p110, %p111
      %p113 = scmp.ne.s32.totalorder %s104, %s105
      %p114 = scmp.eq.s32.totalorder %s19, 0
      %p115 = por %p113, %p114
      %p116 = scmp.ne.s32.totalorder %s104, %s105
      %p117 = scmp.eq.s32.totalorder %s20, 1
      %p118 = por %p116, %p117
      %p120 = scmp.ne.s32.totalorder %s105, %s119
      %p121 = scmp.eq.s32.totalorder %s20, 0
      %p122 = por %p120, %p121
      %s123 = ssub.s32 %s21, %s33
      %s124 = ssub.s32 %s22, %s29
      %s125 = sor.u32 %s123, %s124
      %p126 = scmp.eq.s32.totalorder %s125, 0
      %s128 = sadd.s32 %s127, 1
      %s129 = scalar_select %p126, %s127, %s128
      %p132 = pneg %p126
      %p133 = scmp.eq.s32.totalorder %s14, 1
      %p134 = por %p132, %p133
      %p135 = scmp.ne.s32.totalorder %s127, %s130
      %p136 = scmp.eq.s32.totalorder %s14, 0
      %p137 = por %p135, %p136
      %p138 = scmp.ne.s32.totalorder %s127, %s130
      %p139 = scmp.eq.s32.totalorder %s19, 1
      %p140 = por %p138, %p139
      %p141 = scmp.ne.s32.totalorder %s130, %s131
      %p142 = scmp.eq.s32.totalorder %s19, 0
      %p143 = por %p141, %p142
      %p144 = scmp.ne.s32.totalorder %s130, %s131
      %p145 = scmp.eq.s32.totalorder %s20, 1
      %p146 = por %p144, %p145
      %p148 = scmp.ne.s32.totalorder %s131, %s147
      %p149 = scmp.eq.s32.totalorder %s20, 0
      %p150 = por %p148, %p149
      %p151 = scmp.le.s32.totalorder 1, %s14
      %p152 = scmp.lt.s32.totalorder %s14, 3
      %p153 = pnand %p151, %p152
      %p154 = pneg %p153
      // Predicated region
      $region9: #{tpu_custom_call.1} parent=5 // pred_check
        _
      $region10: #{tpu_custom_call.1} parent=5 // pred_check_branch
        %156 = sbr.rel (%p153) target = $region12
      $region11: #{tpu_custom_call.1} parent=5 // pred_region
        %s157 = ssub.s32 %s14, 1
        // Predicated region
        $region13: #{tpu_custom_call.1} parent=11 // pred_check
          %p158 = pneg %p47
        $region14: #{tpu_custom_call.1} parent=11 // pred_check_branch
          %160 = sbr.rel (%p158) target = $region16
        $region15: #{tpu_custom_call.1} parent=11 // pred_region
          _
        $region16: #{tpu_custom_call.1} parent=11 // pred_fallthru
          _
        // Predicated region
        $region17: #{tpu_custom_call.1} parent=11 // pred_check
          %p161 = pneg %p73
        $region18: #{tpu_custom_call.1} parent=11 // pred_check_branch
          %163 = sbr.rel (%p161) target = $region20
        $region19: #{tpu_custom_call.1} parent=11 // pred_region
          %s164 = smul.u32 2, %s24
          %p165 = scmp.lt.s32.totalorder %s164, 1
          %s166 = scalar_select %p165, %s164, 1
          %s167 = smul.addr %s166, 4
          %s168 = scalar_lea.vmem %s2, %s167
          %s169 = smul.u32 2, %s24
        $region20: #{tpu_custom_call.1} parent=11 // pred_fallthru
          _
        // Predicated region
        $region21: #{tpu_custom_call.1} parent=11 // pred_check
          %p170 = pneg %p94
        $region22: #{tpu_custom_call.1} parent=11 // pred_check_branch
          %172 = sbr.rel (%p170) target = $region24
        $region23: #{tpu_custom_call.1} parent=11 // pred_region
          _
        $region24: #{tpu_custom_call.1} parent=11 // pred_fallthru
          _
        // Predicated region
        $region25: #{tpu_custom_call.1} parent=11 // pred_check
          %p173 = pneg %p115
        $region26: #{tpu_custom_call.1} parent=11 // pred_check_branch
          %175 = sbr.rel (%p173) target = $region28
        $region27: #{tpu_custom_call.1} parent=11 // pred_region
          _
        $region28: #{tpu_custom_call.1} parent=11 // pred_fallthru
          _
      $region12: #{tpu_custom_call.1} parent=5 // pred_fallthru
        _
      %p176 = scmp.lt.s32.totalorder %s14, 2
      // Predicated region
      $region29: #{tpu_custom_call.1} parent=5 // pred_check
        %p177 = pneg %p176
      $region30: #{tpu_custom_call.1} parent=5 // pred_check_branch
        %179 = sbr.rel (%p177) target = $region32
      $region31: #{tpu_custom_call.1} parent=5 // pred_region
        _
      $region32: #{tpu_custom_call.1} parent=5 // pred_fallthru
        _
      %p180 = scmp.le.s32.totalorder 1, %s14
      %p181 = scmp.lt.s32.totalorder %s14, 3
      %p182 = pnand %p180, %p181
      %p183 = pneg %p182
      // Predicated region
      $region33: #{tpu_custom_call.1} parent=5 // pred_check
        _
      $region34: #{tpu_custom_call.1} parent=5 // pred_check_branch
        %185 = sbr.rel (%p182) target = $region36
      $region35: #{tpu_custom_call.1} parent=5 // pred_region
        %s186 = ssub.s32 %s14, 1
        %p187 = pneg %p47
        %p188 = pneg %p44
        %s189 = smul.u32 2, %s24
        %p190 = scmp.lt.s32.totalorder %s189, 1
        %s191 = scalar_select %p190, %s189, 1
        %s192 = smul.addr %s191, 4
        %s193 = scalar_lea.vmem %s2, %s192
        %p194 = pneg %p73
        %p195 = pneg %p70
        %p196 = pneg %p94
        %p197 = pneg %p91
        %p198 = pneg %p115
        %p199 = pneg %p112
        %p200 = pneg %p143
        %p201 = pneg %p140
        %s202 = sand.u32 %s130, 1
        %s203 = scalar_lea.sflag [#allocation5], %s202
        %s204 = sand.u32 %s130, 1
        %s205 = smul.addr %s204, 16
        %s206 = scalar_lea.vmem [#allocation4], %s205
        %s207 = smul.u32 2, %s24
        %p208 = scmp.lt.s32.totalorder %s207, 1
        %s209 = scalar_select %p208, %s207, 1
        %s210 = smul.addr %s209, 4
        %s211 = scalar_lea.vmem %s2, %s210
        %s212 = smul.u32 2, %s24
        %s213 = smul.u32 2, %s24
        %p215 = scmp.lt.s32.totalorder %s24, 0
        %s216 = ssub.s32 0, %s24
        %s217 = scalar_select %p215, %s216, %s24
        %s218 = sand.u32 %s217, 1
        %s219 = ssub.s32 0, %s218
        %s220 = scalar_select %p215, %s219, %s218
        %p221 = scmp.ne.s32.totalorder %s220, 0
        %p222 = scmp.lt.s32.totalorder %s220, 0
        %p223 = pnand %p222, %p221
        %p224 = pneg %p223
        %s225 = sadd.s32 %s220, 2
        %s226 = scalar_select %p224, %s225, %s220
        %p227 = scmp.eq.s32.totalorder %s24, 0
        // Predicated region
        $region37: #{tpu_custom_call.1} parent=35 // pred_check
          %p228 = pneg %p227
        $region38: #{tpu_custom_call.1} parent=35 // pred_check_branch
          %230 = sbr.rel (%p228) target = $region40
        $region39: #{tpu_custom_call.1} parent=35 // pred_region
          %s231 = smul.u32 %s24, 256
          %s232 = sshra.s32 %s231, 7
          %s233 = sand.u32 %s231, 127
          %s234 = smul.u32 %s23, 3
          %s235 = sadd.s32 %s232, %s234
          %s236 = smul.addr %s235, 2
          %s237 = scalar_lea.vmem %s0, %s236
          %s238 = smul.u32 %s226, 3
          %s239 = smul.addr %s238, 2
          %s240 = scalar_lea.vmem [#allocation2], %s239
          %s241 = scalar_lea.sflag [#allocation3], %s226
          %p243 = scmp.lt.u32.totalorder 6, 8
          %p244 = pneg %p243
          // Predicated region
          $region41: #{tpu_custom_call.1} parent=39 // pred_check
            _
          $region42: #{tpu_custom_call.1} parent=39 // pred_check_branch
            %246 = sbr.rel (%p243) target = $region44
          $region43: #{tpu_custom_call.1} parent=39 // pred_region
            %s261 = sand.u32 6, 7
            %p262 = scmp.eq.s32.totalorder %s261, 0
            %p263 = pneg %p262
            // Predicated region
            $region56: #{tpu_custom_call.1} parent=43 // pred_check
              _
            $region57: #{tpu_custom_call.1} parent=43 // pred_check_branch
              %265 = sbr.rel (%p262) target = $region59
            $region58: #{tpu_custom_call.1} parent=43 // pred_region
              %s266 = sand.u32 6, 7
              %s267 = ssub.s32 6, %s266
              %s268 = scalar_lea.vmem %s237, %s267
              %s269 = ssub.s32 6, %s266
              %s270 = scalar_lea.vmem %s240, %s269 [#allocation2]
              %s271 = sshllo.u32 0, %s266
              loop: start=0, step=1, limit=1
              $region60: #{tpu_custom_call.1} parent=58 // loop_pre_header
                _
              $region61: #{tpu_custom_call.1} parent=58 // loop_header
                %s273 = sphi 0, %s277
                %p274 = scmp.ge.s32.totalorder %s273, 1
                %s278 = sphi %s268, %s268
                %s279 = sphi %s270, %s270
              $region62: #{tpu_custom_call.1} parent=58 // loop_header_branch
                %276 = sbr.rel (%p274) target = $region66
              $region63: #{tpu_custom_call.1} parent=58 // loop_body
                %v280 = vld [vmem:[%s278] sm:%s271]
                %281 = vst [vmem:[%s279] sm:%s271] %v280
              $region64: #{tpu_custom_call.1} parent=58 // loop_footer
                %s277 = sadd.s32 1, %s273
              $region65: #{tpu_custom_call.1} parent=58 // loop_footer_branch
                %272 = sbr.rel target = $region61
              $region66: #{tpu_custom_call.1} parent=58 // loop_exit
                _
            $region59: #{tpu_custom_call.1} parent=43 // pred_fallthru
              _
          $region44: #{tpu_custom_call.1} parent=39 // pred_fallthru
            _
          // Predicated region
          $region45: #{tpu_custom_call.1} parent=39 // pred_check
            %p247 = pneg %p243
          $region46: #{tpu_custom_call.1} parent=39 // pred_check_branch
            %249 = sbr.rel (%p247) target = $region48
          $region47: #{tpu_custom_call.1} parent=39 // pred_region
            %s250 = sshllo.u32 0, 6
            loop: start=0, step=1, limit=1
            $region49: #{tpu_custom_call.1} parent=47 // loop_pre_header
              _
            $region50: #{tpu_custom_call.1} parent=47 // loop_header
              %s252 = sphi 0, %s256
              %p253 = scmp.ge.s32.totalorder %s252, 1
              %s257 = sphi %s237, %s237
              %s258 = sphi %s240, %s240
            $region51: #{tpu_custom_call.1} parent=47 // loop_header_branch
              %255 = sbr.rel (%p253) target = $region55
            $region52: #{tpu_custom_call.1} parent=47 // loop_body
              %v259 = vld [vmem:[%s257] sm:%s250]
              %260 = vst [vmem:[%s258] sm:%s250] %v259
            $region53: #{tpu_custom_call.1} parent=47 // loop_footer
              %s256 = sadd.s32 1, %s252
            $region54: #{tpu_custom_call.1} parent=47 // loop_footer_branch
              %251 = sbr.rel target = $region50
            $region55: #{tpu_custom_call.1} parent=47 // loop_exit
              _
          $region48: #{tpu_custom_call.1} parent=39 // pred_fallthru
            _
          // Predicated region
          $region67: #{tpu_custom_call.1} parent=39 // pred_check
            _
          $region68: #{tpu_custom_call.1} parent=39 // pred_check_branch
            %284 = sbr.rel (0) target = $region70
          $region69: #{tpu_custom_call.1} parent=39 // pred_region
            %285 = vsyncadd %s241, 96
          $region70: #{tpu_custom_call.1} parent=39 // pred_fallthru
            _
        $region40: #{tpu_custom_call.1} parent=35 // pred_fallthru
          _
        %s286 = smul.u32 %s226, 3
        %s287 = smul.addr %s286, 2
        %s288 = scalar_lea.vmem [#allocation2], %s287
        %s289 = scalar_lea.sflag [#allocation3], %s226
        %s290 = smul.u32 2, 1
        %s291 = smul.u32 %s290, 3
        %s292 = sshll.u32 %s291, 4
        %293 = dma.done %s289, %s292
        %v294 = vld [vmem:[%s288] sm:$0xf]
        %v295 = vld [vmem:[%s1] sm:$0xf]
        %v296 = vld [vmem:[%s288] sm:$0x3f]
        %s297 = scalar_lea.vmem %s1, 12
        %v298 = vld [vmem:[%s297] sm:$0xf]
        %v300 = vcombine.high %v296, %v296
        %v302 = vunpack.c.l.s4 1983009808
        %v303 = vunpack.c.0.s8 %v302
        %v304 = vlaneseq
        %v305 = vshrl.u32 %v304, 7
        %v306 = vsub.s32 %v303, %v305
        %v307 = vrot.slane %v296, %v306
        %v309 = vunpack.c.l.s4 1983009808
        %v310 = vunpack.c.0.s8 %v309
        %v311 = vlaneseq
        %v312 = vshrl.u32 %v311, 7
        %v313 = vsub.s32 %v310, %v312
        %v314 = vrot.slane %v300, %v313
        %v315 = vcombine.high %v307, %v307
        %316 = vrot.lane.b32.xlu0 %v307, 112
        %v317 = vpop.permute.xlu0 %316
        %318 = vrot.lane.b32.xlu0 %v315, 112
        %v319 = vpop.permute.xlu0 %318
        %320 = vrot.lane.b32.xlu0 %v314, 112
        %v321 = vpop.permute.xlu0 %320
        %vm322 = vcmask 916480
        %v323 = vsel %vm322, %v317, %v319
        %v324 = vsel %vm322, %v319, %v321
        %vm325 = vcmask 31744
        %v327 = vsel %vm325, %v298, 0
        %vm329 = vcmask 1041408
        %v331 = vsel %vm329, %v323, 0
        %v334 = vsel %vm329, %v324, 0
        %336 = vmatprep.subr.bf16.mxu0 %v334
        %337 = vmatpush1.bf16.msra.mxu0 %v331
        %338 = vmatprep.subr.bf16.mxu0 0
        %339 = vmatpush1.bf16.msra.mxu0 0
        %340 = vmatprep.subr.bf16.mxu0 0
        %341 = vmatpush1.bf16.msra.mxu0 0
        %342 = vmatprep.subr.bf16.mxu0 0
        %343 = vmatpush1.bf16.msra.mxu0 0
        %344 = vmatprep.subr.bf16.mxu0 0
        %345 = vmatpush1.bf16.msra.mxu0 0
        %346 = vmatprep.subr.bf16.mxu0 0
        %347 = vmatpush1.bf16.msra.mxu0 0
        %348 = vmatprep.subr.bf16.mxu0 0
        %349 = vmatpush1.bf16.msra.mxu0 0
        %350 = vmatprep.subr.bf16.mxu0 0
        %351 = vmatpush1.bf16.msra.mxu0 0
        %352 = vmatprep.subr.bf16.mxu0 0
        %353 = vmatpush1.bf16.msra.mxu0 0
        %354 = vmatprep.subr.bf16.mxu0 0
        %355 = vmatpush1.bf16.msra.mxu0 0
        %356 = vmatprep.subr.bf16.mxu0 0
        %357 = vmatpush1.bf16.msra.mxu0 0
        %358 = vmatprep.subr.bf16.mxu0 0
        %359 = vmatpush1.bf16.msra.mxu0 0
        %360 = vmatprep.subr.bf16.mxu0 0
        %361 = vmatpush1.bf16.msra.mxu0 0
        %362 = vmatprep.subr.bf16.mxu0 0
        %363 = vmatpush1.bf16.msra.mxu0 0
        %364 = vmatprep.subr.bf16.mxu0 0
        %365 = vmatpush1.bf16.msra.mxu0 0
        %366 = vmatprep.subr.bf16.mxu0 0
        %367 = vmatpush1.bf16.msra.mxu0 0
        %368 = vmatprep.mubr.bf16.mxu0 0
        %369 = vmatmul.mubr.bf16.gmra.mrb[0].mxu0 %v327
        %v370 = vpop.f32.mrb[0].mxu0
        %v371 = vadd.f32 0.0, %v370
        %v372 = vpop.f32.mrb[0].mxu0
        %v373 = vadd.f32 0.0, %v372
        %v374 = vpop.f32.mrb[0].mxu0
        %v375 = vpop.f32.mrb[0].mxu0
        %376 = vdwg.mxu0
        %v379 = vunpack.c.l.s4 1983009808
        %v380 = vunpack.c.0.s8 %v379
        %v381 = vlaneseq
        %v382 = vshrl.u32 %v381, 7
        %v383 = vsub.s32 %v380, %v382
        %v384 = vrot.slane %v294, %v383
        %v385 = vcombine.high %v384, %v384
        %v387 = vsel %vm325, %v295, 0
        %v390 = vsel %vm329, %v384, 0
        %v393 = vsel %vm329, %v385, 0
        %395 = vmatprep.subr.bf16.mxu0 %v393
        %396 = vmatpush1.bf16.msra.mxu0 %v390
        %397 = vmatprep.subr.bf16.mxu0 0
        %398 = vmatpush1.bf16.msra.mxu0 0
        %399 = vmatprep.subr.bf16.mxu0 0
        %400 = vmatpush1.bf16.msra.mxu0 0
        %401 = vmatprep.subr.bf16.mxu0 0
        %402 = vmatpush1.bf16.msra.mxu0 0
        %403 = vmatprep.subr.bf16.mxu0 0
        %404 = vmatpush1.bf16.msra.mxu0 0
        %405 = vmatprep.subr.bf16.mxu0 0
        %406 = vmatpush1.bf16.msra.mxu0 0
        %407 = vmatprep.subr.bf16.mxu0 0
        %408 = vmatpush1.bf16.msra.mxu0 0
        %409 = vmatprep.subr.bf16.mxu0 0
        %410 = vmatpush1.bf16.msra.mxu0 0
        %411 = vmatprep.subr.bf16.mxu0 0
        %412 = vmatpush1.bf16.msra.mxu0 0
        %413 = vmatprep.subr.bf16.mxu0 0
        %414 = vmatpush1.bf16.msra.mxu0 0
        %415 = vmatprep.subr.bf16.mxu0 0
        %416 = vmatpush1.bf16.msra.mxu0 0
        %417 = vmatprep.subr.bf16.mxu0 0
        %418 = vmatpush1.bf16.msra.mxu0 0
        %419 = vmatprep.subr.bf16.mxu0 0
        %420 = vmatpush1.bf16.msra.mxu0 0
        %421 = vmatprep.subr.bf16.mxu0 0
        %422 = vmatpush1.bf16.msra.mxu0 0
        %423 = vmatprep.subr.bf16.mxu0 0
        %424 = vmatpush1.bf16.msra.mxu0 0
        %425 = vmatprep.subr.bf16.mxu0 0
        %426 = vmatpush1.bf16.msra.mxu0 0
        %427 = vmatprep.mubr.bf16.mxu0 0
        %428 = vmatmul.mubr.bf16.gmra.mrb[0].mxu0 %v387
        %v429 = vpop.f32.mrb[0].mxu0
        %v430 = vadd.f32 %v371, %v429
        %v431 = vpop.f32.mrb[0].mxu0
        %v432 = vadd.f32 %v373, %v431
        %v433 = vpop.f32.mrb[0].mxu0
        %v434 = vpop.f32.mrb[0].mxu0
        %435 = vdwg.mxu0
        %v436 = vld [vmem:[%s288] sm:$0x3f]
        %s437 = scalar_lea.vmem %s1, 24
        %v438 = vld [vmem:[%s437] sm:$0xf]
        %v440 = vcombine.high %v436, %v436
        %v442 = vunpack.c.l.s4 1983009808
        %v443 = vunpack.c.0.s8 %v442
        %v444 = vlaneseq
        %v445 = vshrl.u32 %v444, 7
        %v446 = vsub.s32 %v443, %v445
        %v447 = vrot.slane %v436, %v446
        %v449 = vunpack.c.l.s4 1983009808
        %v450 = vunpack.c.0.s8 %v449
        %v451 = vlaneseq
        %v452 = vshrl.u32 %v451, 7
        %v453 = vsub.s32 %v450, %v452
        %v454 = vrot.slane %v440, %v453
        %v455 = vcombine.high %v447, %v447
        %456 = vrot.lane.b32.xlu0 %v447, 96
        %v457 = vpop.permute.xlu0 %456
        %458 = vrot.lane.b32.xlu0 %v455, 96
        %v459 = vpop.permute.xlu0 %458
        %460 = vrot.lane.b32.xlu0 %v454, 96
        %v461 = vpop.permute.xlu0 %460
        %vm462 = vcmask 785408
        %v463 = vsel %vm462, %v457, %v459
        %v464 = vsel %vm462, %v459, %v461
        %v466 = vsel %vm325, %v438, 0
        %v469 = vsel %vm329, %v463, 0
        %v472 = vsel %vm329, %v464, 0
        %474 = vmatprep.subr.bf16.mxu0 %v472
        %475 = vmatpush1.bf16.msra.mxu0 %v469
        %476 = vmatprep.subr.bf16.mxu0 0
        %477 = vmatpush1.bf16.msra.mxu0 0
        %478 = vmatprep.subr.bf16.mxu0 0
        %479 = vmatpush1.bf16.msra.mxu0 0
        %480 = vmatprep.subr.bf16.mxu0 0
        %481 = vmatpush1.bf16.msra.mxu0 0
        %482 = vmatprep.subr.bf16.mxu0 0
        %483 = vmatpush1.bf16.msra.mxu0 0
        %484 = vmatprep.subr.bf16.mxu0 0
        %485 = vmatpush1.bf16.msra.mxu0 0
        %486 = vmatprep.subr.bf16.mxu0 0
        %487 = vmatpush1.bf16.msra.mxu0 0
        %488 = vmatprep.subr.bf16.mxu0 0
        %489 = vmatpush1.bf16.msra.mxu0 0
        %490 = vmatprep.subr.bf16.mxu0 0
        %491 = vmatpush1.bf16.msra.mxu0 0
        %492 = vmatprep.subr.bf16.mxu0 0
        %493 = vmatpush1.bf16.msra.mxu0 0
        %494 = vmatprep.subr.bf16.mxu0 0
        %495 = vmatpush1.bf16.msra.mxu0 0
        %496 = vmatprep.subr.bf16.mxu0 0
        %497 = vmatpush1.bf16.msra.mxu0 0
        %498 = vmatprep.subr.bf16.mxu0 0
        %499 = vmatpush1.bf16.msra.mxu0 0
        %500 = vmatprep.subr.bf16.mxu0 0
        %501 = vmatpush1.bf16.msra.mxu0 0
        %502 = vmatprep.subr.bf16.mxu0 0
        %503 = vmatpush1.bf16.msra.mxu0 0
        %504 = vmatprep.subr.bf16.mxu0 0
        %505 = vmatpush1.bf16.msra.mxu0 0
        %506 = vmatprep.mubr.bf16.mxu0 0
        %507 = vmatmul.mubr.bf16.gmra.mrb[0].mxu0 %v466
        %v508 = vpop.f32.mrb[0].mxu0
        %v509 = vadd.f32 0.0, %v508
        %v510 = vpop.f32.mrb[0].mxu0
        %v511 = vadd.f32 0.0, %v510
        %v512 = vpop.f32.mrb[0].mxu0
        %v513 = vpop.f32.mrb[0].mxu0
        %514 = vdwg.mxu0
        %v515 = vadd.f32 %v430, %v509
        %v516 = vadd.f32 %v432, %v511
        %v517 = vld [vmem:[%s211] ss:$4 sm:$0x3]
        %v519 = vlaneseq
        %v520 = vshrl.u32 %v519, 7
        %v521 = vsub.s32 0, %v520
        %v522 = vrot.slane %v517, %v521
        %v523 = vlaneseq
        %v524 = vshrl.u32 %v523, 7
        %v525 = vsub.s32 1, %v524
        %v526 = vrot.slane %v517, %v525
        %v529 = vmul.f32 %v515, %v522
        %v530 = vmul.f32 %v516, %v526
        %v531 = vld [vmem:[%s288] sm:$0x3f]
        %s532 = scalar_lea.vmem %s1, 4
        %v533 = vld [vmem:[%s532] sm:$0xf]
        %s534 = scalar_lea.vmem %s1, 16
        %v535 = vld [vmem:[%s534] sm:$0xf]
        %v537 = vcombine.high %v531, %v531
        %v539 = vunpack.c.l.s4 1983009808
        %v540 = vunpack.c.0.s8 %v539
        %v541 = vlaneseq
        %v542 = vshrl.u32 %v541, 7
        %v543 = vsub.s32 %v540, %v542
        %v544 = vrot.slane %v531, %v543
        %v546 = vunpack.c.l.s4 1983009808
        %v547 = vunpack.c.0.s8 %v546
        %v548 = vlaneseq
        %v549 = vshrl.u32 %v548, 7
        %v550 = vsub.s32 %v547, %v549
        %v551 = vrot.slane %v537, %v550
        %v552 = vcombine.high %v544, %v544
        %553 = vrot.lane.b32.xlu0 %v544, 111
        %v554 = vpop.permute.xlu0 %553
        %555 = vrot.lane.b32.xlu0 %v552, 111
        %v556 = vpop.permute.xlu0 %555
        %557 = vrot.lane.b32.xlu0 %v551, 111
        %v558 = vpop.permute.xlu0 %557
        %vm559 = vcmask 908288
        %v560 = vsel %vm559, %v554, %v556
        %v561 = vsel %vm559, %v556, %v558
        %v563 = vsel %vm325, %v535, 0
        %v566 = vsel %vm329, %v560, 0
        %v569 = vsel %vm329, %v561, 0
        %571 = vmatprep.subr.bf16.mxu0 %v569
        %572 = vmatpush1.bf16.msra.mxu0 %v566
        %573 = vmatprep.subr.bf16.mxu0 0
        %574 = vmatpush1.bf16.msra.mxu0 0
        %575 = vmatprep.subr.bf16.mxu0 0
        %576 = vmatpush1.bf16.msra.mxu0 0
        %577 = vmatprep.subr.bf16.mxu0 0
        %578 = vmatpush1.bf16.msra.mxu0 0
        %579 = vmatprep.subr.bf16.mxu0 0
        %580 = vmatpush1.bf16.msra.mxu0 0
        %581 = vmatprep.subr.bf16.mxu0 0
        %582 = vmatpush1.bf16.msra.mxu0 0
        %583 = vmatprep.subr.bf16.mxu0 0
        %584 = vmatpush1.bf16.msra.mxu0 0
        %585 = vmatprep.subr.bf16.mxu0 0
        %586 = vmatpush1.bf16.msra.mxu0 0
        %587 = vmatprep.subr.bf16.mxu0 0
        %588 = vmatpush1.bf16.msra.mxu0 0
        %589 = vmatprep.subr.bf16.mxu0 0
        %590 = vmatpush1.bf16.msra.mxu0 0
        %591 = vmatprep.subr.bf16.mxu0 0
        %592 = vmatpush1.bf16.msra.mxu0 0
        %593 = vmatprep.subr.bf16.mxu0 0
        %594 = vmatpush1.bf16.msra.mxu0 0
        %595 = vmatprep.subr.bf16.mxu0 0
        %596 = vmatpush1.bf16.msra.mxu0 0
        %597 = vmatprep.subr.bf16.mxu0 0
        %598 = vmatpush1.bf16.msra.mxu0 0
        %599 = vmatprep.subr.bf16.mxu0 0
        %600 = vmatpush1.bf16.msra.mxu0 0
        %601 = vmatprep.subr.bf16.mxu0 0
        %602 = vmatpush1.bf16.msra.mxu0 0
        %603 = vmatprep.mubr.bf16.mxu0 0
        %604 = vmatmul.mubr.bf16.gmra.mrb[0].mxu0 %v563
        %v605 = vpop.f32.mrb[0].mxu0
        %v606 = vadd.f32 0.0, %v605
        %v607 = vpop.f32.mrb[0].mxu0
        %v608 = vadd.f32 0.0, %v607
        %v609 = vpop.f32.mrb[0].mxu0
        %v610 = vpop.f32.mrb[0].mxu0
        %611 = vdwg.mxu0
        %612 = vrot.lane.b32.xlu0 %v544, 127
        %v613 = vpop.permute.xlu0 %612
        %614 = vrot.lane.b32.xlu0 %v552, 127
        %v615 = vpop.permute.xlu0 %614
        %616 = vrot.lane.b32.xlu0 %v551, 127
        %v617 = vpop.permute.xlu0 %616
        %vm618 = vcmask 1039360
        %v619 = vsel %vm618, %v613, %v615
        %v620 = vsel %vm618, %v615, %v617
        %v622 = vsel %vm325, %v533, 0
        %v625 = vsel %vm329, %v619, 0
        %v628 = vsel %vm329, %v620, 0
        %630 = vmatprep.subr.bf16.mxu0 %v628
        %631 = vmatpush1.bf16.msra.mxu0 %v625
        %632 = vmatprep.subr.bf16.mxu0 0
        %633 = vmatpush1.bf16.msra.mxu0 0
        %634 = vmatprep.subr.bf16.mxu0 0
        %635 = vmatpush1.bf16.msra.mxu0 0
        %636 = vmatprep.subr.bf16.mxu0 0
        %637 = vmatpush1.bf16.msra.mxu0 0
        %638 = vmatprep.subr.bf16.mxu0 0
        %639 = vmatpush1.bf16.msra.mxu0 0
        %640 = vmatprep.subr.bf16.mxu0 0
        %641 = vmatpush1.bf16.msra.mxu0 0
        %642 = vmatprep.subr.bf16.mxu0 0
        %643 = vmatpush1.bf16.msra.mxu0 0
        %644 = vmatprep.subr.bf16.mxu0 0
        %645 = vmatpush1.bf16.msra.mxu0 0
        %646 = vmatprep.subr.bf16.mxu0 0
        %647 = vmatpush1.bf16.msra.mxu0 0
        %648 = vmatprep.subr.bf16.mxu0 0
        %649 = vmatpush1.bf16.msra.mxu0 0
        %650 = vmatprep.subr.bf16.mxu0 0
        %651 = vmatpush1.bf16.msra.mxu0 0
        %652 = vmatprep.subr.bf16.mxu0 0
        %653 = vmatpush1.bf16.msra.mxu0 0
        %654 = vmatprep.subr.bf16.mxu0 0
        %655 = vmatpush1.bf16.msra.mxu0 0
        %656 = vmatprep.subr.bf16.mxu0 0
        %657 = vmatpush1.bf16.msra.mxu0 0
        %658 = vmatprep.subr.bf16.mxu0 0
        %659 = vmatpush1.bf16.msra.mxu0 0
        %660 = vmatprep.subr.bf16.mxu0 0
        %661 = vmatpush1.bf16.msra.mxu0 0
        %662 = vmatprep.mubr.bf16.mxu0 0
        %663 = vmatmul.mubr.bf16.gmra.mrb[0].mxu0 %v622
        %v664 = vpop.f32.mrb[0].mxu0
        %v665 = vadd.f32 %v606, %v664
        %v666 = vpop.f32.mrb[0].mxu0
        %v667 = vadd.f32 %v608, %v666
        %v668 = vpop.f32.mrb[0].mxu0
        %v669 = vpop.f32.mrb[0].mxu0
        %670 = vdwg.mxu0
        %v671 = vld [vmem:[%s288] sm:$0x3f]
        %s672 = scalar_lea.vmem %s1, 28
        %v673 = vld [vmem:[%s672] sm:$0xf]
        %v675 = vcombine.high %v671, %v671
        %v677 = vunpack.c.l.s4 1983009808
        %v678 = vunpack.c.0.s8 %v677
        %v679 = vlaneseq
        %v680 = vshrl.u32 %v679, 7
        %v681 = vsub.s32 %v678, %v680
        %v682 = vrot.slane %v671, %v681
        %v684 = vunpack.c.l.s4 1983009808
        %v685 = vunpack.c.0.s8 %v684
        %v686 = vlaneseq
        %v687 = vshrl.u32 %v686, 7
        %v688 = vsub.s32 %v685, %v687
        %v689 = vrot.slane %v675, %v688
        %v690 = vcombine.high %v682, %v682
        %691 = vrot.lane.b32.xlu0 %v682, 95
        %v692 = vpop.permute.xlu0 %691
        %693 = vrot.lane.b32.xlu0 %v690, 95
        %v694 = vpop.permute.xlu0 %693
        %695 = vrot.lane.b32.xlu0 %v689, 95
        %v696 = vpop.permute.xlu0 %695
        %vm697 = vcmask 777216
        %v698 = vsel %vm697, %v692, %v694
        %v699 = vsel %vm697, %v694, %v696
        %v701 = vsel %vm325, %v673, 0
        %v704 = vsel %vm329, %v698, 0
        %v707 = vsel %vm329, %v699, 0
        %709 = vmatprep.subr.bf16.mxu0 %v707
        %710 = vmatpush1.bf16.msra.mxu0 %v704
        %711 = vmatprep.subr.bf16.mxu0 0
        %712 = vmatpush1.bf16.msra.mxu0 0
        %713 = vmatprep.subr.bf16.mxu0 0
        %714 = vmatpush1.bf16.msra.mxu0 0
        %715 = vmatprep.subr.bf16.mxu0 0
        %716 = vmatpush1.bf16.msra.mxu0 0
        %717 = vmatprep.subr.bf16.mxu0 0
        %718 = vmatpush1.bf16.msra.mxu0 0
        %719 = vmatprep.subr.bf16.mxu0 0
        %720 = vmatpush1.bf16.msra.mxu0 0
        %721 = vmatprep.subr.bf16.mxu0 0
        %722 = vmatpush1.bf16.msra.mxu0 0
        %723 = vmatprep.subr.bf16.mxu0 0
        %724 = vmatpush1.bf16.msra.mxu0 0
        %725 = vmatprep.subr.bf16.mxu0 0
        %726 = vmatpush1.bf16.msra.mxu0 0
        %727 = vmatprep.subr.bf16.mxu0 0
        %728 = vmatpush1.bf16.msra.mxu0 0
        %729 = vmatprep.subr.bf16.mxu0 0
        %730 = vmatpush1.bf16.msra.mxu0 0
        %731 = vmatprep.subr.bf16.mxu0 0
        %732 = vmatpush1.bf16.msra.mxu0 0
        %733 = vmatprep.subr.bf16.mxu0 0
        %734 = vmatpush1.bf16.msra.mxu0 0
        %735 = vmatprep.subr.bf16.mxu0 0
        %736 = vmatpush1.bf16.msra.mxu0 0
        %737 = vmatprep.subr.bf16.mxu0 0
        %738 = vmatpush1.bf16.msra.mxu0 0
        %739 = vmatprep.subr.bf16.mxu0 0
        %740 = vmatpush1.bf16.msra.mxu0 0
        %741 = vmatprep.mubr.bf16.mxu0 0
        %742 = vmatmul.mubr.bf16.gmra.mrb[0].mxu0 %v701
        %v743 = vpop.f32.mrb[0].mxu0
        %v744 = vadd.f32 0.0, %v743
        %v745 = vpop.f32.mrb[0].mxu0
        %v746 = vadd.f32 0.0, %v745
        %v747 = vpop.f32.mrb[0].mxu0
        %v748 = vpop.f32.mrb[0].mxu0
        %749 = vdwg.mxu0
        %v750 = vadd.f32 %v665, %v744
        %v751 = vadd.f32 %v667, %v746
        %v752 = vadd.f32 %v529, %v750
        %v753 = vadd.f32 %v530, %v751
        %v754 = vld [vmem:[%s288] sm:$0x3f]
        %s755 = scalar_lea.vmem %s1, 8
        %v756 = vld [vmem:[%s755] sm:$0xf]
        %s757 = scalar_lea.vmem %s1, 20
        %v758 = vld [vmem:[%s757] sm:$0xf]
        %v760 = vcombine.high %v754, %v754
        %v762 = vunpack.c.l.s4 1983009808
        %v763 = vunpack.c.0.s8 %v762
        %v764 = vlaneseq
        %v765 = vshrl.u32 %v764, 7
        %v766 = vsub.s32 %v763, %v765
        %v767 = vrot.slane %v754, %v766
        %v769 = vunpack.c.l.s4 1983009808
        %v770 = vunpack.c.0.s8 %v769
        %v771 = vlaneseq
        %v772 = vshrl.u32 %v771, 7
        %v773 = vsub.s32 %v770, %v772
        %v774 = vrot.slane %v760, %v773
        %v775 = vcombine.high %v767, %v767
        %776 = vrot.lane.b32.xlu0 %v767, 110
        %v777 = vpop.permute.xlu0 %776
        %778 = vrot.lane.b32.xlu0 %v775, 110
        %v779 = vpop.permute.xlu0 %778
        %780 = vrot.lane.b32.xlu0 %v774, 110
        %v781 = vpop.permute.xlu0 %780
        %vm782 = vcmask 900096
        %v783 = vsel %vm782, %v777, %v779
        %v784 = vsel %vm782, %v779, %v781
        %v786 = vsel %vm325, %v758, 0
        %v789 = vsel %vm329, %v783, 0
        %v792 = vsel %vm329, %v784, 0
        %794 = vmatprep.subr.bf16.mxu0 %v792
        %795 = vmatpush1.bf16.msra.mxu0 %v789
        %796 = vmatprep.subr.bf16.mxu0 0
        %797 = vmatpush1.bf16.msra.mxu0 0
        %798 = vmatprep.subr.bf16.mxu0 0
        %799 = vmatpush1.bf16.msra.mxu0 0
        %800 = vmatprep.subr.bf16.mxu0 0
        %801 = vmatpush1.bf16.msra.mxu0 0
        %802 = vmatprep.subr.bf16.mxu0 0
        %803 = vmatpush1.bf16.msra.mxu0 0
        %804 = vmatprep.subr.bf16.mxu0 0
        %805 = vmatpush1.bf16.msra.mxu0 0
        %806 = vmatprep.subr.bf16.mxu0 0
        %807 = vmatpush1.bf16.msra.mxu0 0
        %808 = vmatprep.subr.bf16.mxu0 0
        %809 = vmatpush1.bf16.msra.mxu0 0
        %810 = vmatprep.subr.bf16.mxu0 0
        %811 = vmatpush1.bf16.msra.mxu0 0
        %812 = vmatprep.subr.bf16.mxu0 0
        %813 = vmatpush1.bf16.msra.mxu0 0
        %814 = vmatprep.subr.bf16.mxu0 0
        %815 = vmatpush1.bf16.msra.mxu0 0
        %816 = vmatprep.subr.bf16.mxu0 0
        %817 = vmatpush1.bf16.msra.mxu0 0
        %818 = vmatprep.subr.bf16.mxu0 0
        %819 = vmatpush1.bf16.msra.mxu0 0
        %820 = vmatprep.subr.bf16.mxu0 0
        %821 = vmatpush1.bf16.msra.mxu0 0
        %822 = vmatprep.subr.bf16.mxu0 0
        %823 = vmatpush1.bf16.msra.mxu0 0
        %824 = vmatprep.subr.bf16.mxu0 0
        %825 = vmatpush1.bf16.msra.mxu0 0
        %826 = vmatprep.mubr.bf16.mxu0 0
        %827 = vmatmul.mubr.bf16.gmra.mrb[0].mxu0 %v786
        %v828 = vpop.f32.mrb[0].mxu0
        %v829 = vadd.f32 0.0, %v828
        %v830 = vpop.f32.mrb[0].mxu0
        %v831 = vadd.f32 0.0, %v830
        %v832 = vpop.f32.mrb[0].mxu0
        %v833 = vpop.f32.mrb[0].mxu0
        %834 = vdwg.mxu0
        %835 = vrot.lane.b32.xlu0 %v767, 126
        %v836 = vpop.permute.xlu0 %835
        %837 = vrot.lane.b32.xlu0 %v775, 126
        %v838 = vpop.permute.xlu0 %837
        %839 = vrot.lane.b32.xlu0 %v774, 126
        %v840 = vpop.permute.xlu0 %839
        %vm841 = vcmask 1031168
        %v842 = vsel %vm841, %v836, %v838
        %v843 = vsel %vm841, %v838, %v840
        %v845 = vsel %vm325, %v756, 0
        %v848 = vsel %vm329, %v842, 0
        %v851 = vsel %vm329, %v843, 0
        %853 = vmatprep.subr.bf16.mxu0 %v851
        %854 = vmatpush1.bf16.msra.mxu0 %v848
        %855 = vmatprep.subr.bf16.mxu0 0
        %856 = vmatpush1.bf16.msra.mxu0 0
        %857 = vmatprep.subr.bf16.mxu0 0
        %858 = vmatpush1.bf16.msra.mxu0 0
        %859 = vmatprep.subr.bf16.mxu0 0
        %860 = vmatpush1.bf16.msra.mxu0 0
        %861 = vmatprep.subr.bf16.mxu0 0
        %862 = vmatpush1.bf16.msra.mxu0 0
        %863 = vmatprep.subr.bf16.mxu0 0
        %864 = vmatpush1.bf16.msra.mxu0 0
        %865 = vmatprep.subr.bf16.mxu0 0
        %866 = vmatpush1.bf16.msra.mxu0 0
        %867 = vmatprep.subr.bf16.mxu0 0
        %868 = vmatpush1.bf16.msra.mxu0 0
        %869 = vmatprep.subr.bf16.mxu0 0
        %870 = vmatpush1.bf16.msra.mxu0 0
        %871 = vmatprep.subr.bf16.mxu0 0
        %872 = vmatpush1.bf16.msra.mxu0 0
        %873 = vmatprep.subr.bf16.mxu0 0
        %874 = vmatpush1.bf16.msra.mxu0 0
        %875 = vmatprep.subr.bf16.mxu0 0
        %876 = vmatpush1.bf16.msra.mxu0 0
        %877 = vmatprep.subr.bf16.mxu0 0
        %878 = vmatpush1.bf16.msra.mxu0 0
        %879 = vmatprep.subr.bf16.mxu0 0
        %880 = vmatpush1.bf16.msra.mxu0 0
        %881 = vmatprep.subr.bf16.mxu0 0
        %882 = vmatpush1.bf16.msra.mxu0 0
        %883 = vmatprep.subr.bf16.mxu0 0
        %884 = vmatpush1.bf16.msra.mxu0 0
        %885 = vmatprep.mubr.bf16.mxu0 0
        %886 = vmatmul.mubr.bf16.gmra.mrb[0].mxu0 %v845
        %v887 = vpop.f32.mrb[0].mxu0
        %v888 = vadd.f32 %v829, %v887
        %v889 = vpop.f32.mrb[0].mxu0
        %v890 = vadd.f32 %v831, %v889
        %v891 = vpop.f32.mrb[0].mxu0
        %v892 = vpop.f32.mrb[0].mxu0
        %893 = vdwg.mxu0
        %v894 = vld [vmem:[%s288] sm:$0x3f]
        %s895 = scalar_lea.vmem %s1, 32
        %v896 = vld [vmem:[%s895] sm:$0xf]
        %v898 = vcombine.high %v894, %v894
        %v900 = vunpack.c.l.s4 1983009808
        %v901 = vunpack.c.0.s8 %v900
        %v902 = vlaneseq
        %v903 = vshrl.u32 %v902, 7
        %v904 = vsub.s32 %v901, %v903
        %v905 = vrot.slane %v894, %v904
        %v907 = vunpack.c.l.s4 1983009808
        %v908 = vunpack.c.0.s8 %v907
        %v909 = vlaneseq
        %v910 = vshrl.u32 %v909, 7
        %v911 = vsub.s32 %v908, %v910
        %v912 = vrot.slane %v898, %v911
        %v913 = vcombine.high %v905, %v905
        %914 = vrot.lane.b32.xlu0 %v905, 94
        %v915 = vpop.permute.xlu0 %914
        %916 = vrot.lane.b32.xlu0 %v913, 94
        %v917 = vpop.permute.xlu0 %916
        %918 = vrot.lane.b32.xlu0 %v912, 94
        %v919 = vpop.permute.xlu0 %918
        %vm920 = vcmask 769024
        %v921 = vsel %vm920, %v915, %v917
        %v922 = vsel %vm920, %v917, %v919
        %v924 = vsel %vm325, %v896, 0
        %v927 = vsel %vm329, %v921, 0
        %v930 = vsel %vm329, %v922, 0
        %932 = vmatprep.subr.bf16.mxu0 %v930
        %933 = vmatpush1.bf16.msra.mxu0 %v927
        %934 = vmatprep.subr.bf16.mxu0 0
        %935 = vmatpush1.bf16.msra.mxu0 0
        %936 = vmatprep.subr.bf16.mxu0 0
        %937 = vmatpush1.bf16.msra.mxu0 0
        %938 = vmatprep.subr.bf16.mxu0 0
        %939 = vmatpush1.bf16.msra.mxu0 0
        %940 = vmatprep.subr.bf16.mxu0 0
        %941 = vmatpush1.bf16.msra.mxu0 0
        %942 = vmatprep.subr.bf16.mxu0 0
        %943 = vmatpush1.bf16.msra.mxu0 0
        %944 = vmatprep.subr.bf16.mxu0 0
        %945 = vmatpush1.bf16.msra.mxu0 0
        %946 = vmatprep.subr.bf16.mxu0 0
        %947 = vmatpush1.bf16.msra.mxu0 0
        %948 = vmatprep.subr.bf16.mxu0 0
        %949 = vmatpush1.bf16.msra.mxu0 0
        %950 = vmatprep.subr.bf16.mxu0 0
        %951 = vmatpush1.bf16.msra.mxu0 0
        %952 = vmatprep.subr.bf16.mxu0 0
        %953 = vmatpush1.bf16.msra.mxu0 0
        %954 = vmatprep.subr.bf16.mxu0 0
        %955 = vmatpush1.bf16.msra.mxu0 0
        %956 = vmatprep.subr.bf16.mxu0 0
        %957 = vmatpush1.bf16.msra.mxu0 0
        %958 = vmatprep.subr.bf16.mxu0 0
        %959 = vmatpush1.bf16.msra.mxu0 0
        %960 = vmatprep.subr.bf16.mxu0 0
        %961 = vmatpush1.bf16.msra.mxu0 0
        %962 = vmatprep.subr.bf16.mxu0 0
        %963 = vmatpush1.bf16.msra.mxu0 0
        %964 = vmatprep.mubr.bf16.mxu0 0
        %965 = vmatmul.mubr.bf16.gmra.mrb[0].mxu0 %v924
        %v966 = vpop.f32.mrb[0].mxu0
        %v967 = vadd.f32 0.0, %v966
        %v968 = vpop.f32.mrb[0].mxu0
        %v969 = vadd.f32 0.0, %v968
        %v970 = vpop.f32.mrb[0].mxu0
        %v971 = vpop.f32.mrb[0].mxu0
        %972 = vdwg.mxu0
        %v973 = vadd.f32 %v888, %v967
        %v974 = vadd.f32 %v890, %v969
        %s975 = scalar_lea.vmem %s211, 2
        %v976 = vld [vmem:[%s975] ss:$4 sm:$0x3]
        %v978 = vlaneseq
        %v979 = vshrl.u32 %v978, 7
        %v980 = vsub.s32 0, %v979
        %v981 = vrot.slane %v976, %v980
        %v982 = vlaneseq
        %v983 = vshrl.u32 %v982, 7
        %v984 = vsub.s32 1, %v983
        %v985 = vrot.slane %v976, %v984
        %v988 = vmul.f32 %v973, %v981
        %v989 = vmul.f32 %v974, %v985
        %v990 = vadd.f32 %v752, %v988
        %v991 = vadd.f32 %v753, %v989
        %v992 = vld [vmem:[%s3] sm:$0xff]
        %994 = vset.pattern.permute.xlu0 0
        %995 = vperm.xlu0 %994, %v992
        %v996 = vpop.permute.xlu0 %995
        %v998 = vmul.f32 %v990, %v996
        %v999 = vmul.f32 %v991, %v996
        %v1000 = vld [vmem:[%s4] sm:$0xff]
        %1002 = vset.pattern.permute.xlu0 0
        %1003 = vperm.xlu0 %1002, %v1000
        %v1004 = vpop.permute.xlu0 %1003
        %v1006 = vadd.f32 %v998, %v1004
        %v1007 = vadd.f32 %v999, %v1004
        %v1008 = vmax.f32 %v1006, 0.0
        %v1009 = vmax.f32 %v1007, 0.0
        %1010 = vst [vmem:[%s206] sm:$0xff] %v1008
        %1011 = vst [vmem:[%s206 + $0x8] sm:$0xff] %v1009
        %s1012 = sand.u32 %s130, 1
        %s1013 = scalar_lea.sflag [#allocation5], %s1012
        %s1014 = sand.u32 %s130, 1
        %s1015 = smul.addr %s1014, 16
        %s1016 = scalar_lea.vmem [#allocation4], %s1015
        // Predicated region
        $region71: #{tpu_custom_call.1} parent=35 // pred_check
          %p1017 = pneg %p140
        $region72: #{tpu_custom_call.1} parent=35 // pred_check_branch
          %1019 = sbr.rel (%p1017) target = $region74
        $region73: #{tpu_custom_call.1} parent=35 // pred_region
          %s1020 = smul.u32 2, %s24
          %s1022 = ssub.s32 256, 256
          %1023 = vsyncadd %s1013, %s1022
          %s1024 = smul.addr %s23, 2
          %s1025 = sadd.s32 %s1020, %s1024
          %s1026 = smul.addr %s1025, 128
          %s1027 = scalar_lea.hbm %s5, %s1026
          %s1029 = sshll.u32 %s1016, 4
          %s1030 = int_to_ptr.vmem [resolvable:$true] %s1029
          %1032 = dma.vmem_to_hbm [thread:$0]  %s1030, 256, %s1027, %s1013
        $region74: #{tpu_custom_call.1} parent=35 // pred_fallthru
          _
      $region36: #{tpu_custom_call.1} parent=5 // pred_fallthru
        _
      %p1033 = scmp.le.s32.totalorder 2, %s14
      // Predicated region
      $region75: #{tpu_custom_call.1} parent=5 // pred_check
        %p1034 = pneg %p1033
      $region76: #{tpu_custom_call.1} parent=5 // pred_check_branch
        %1036 = sbr.rel (%p1034) target = $region78
      $region77: #{tpu_custom_call.1} parent=5 // pred_region
        %s1037 = ssub.s32 %s14, 2
        // Predicated region
        $region79: #{tpu_custom_call.1} parent=77 // pred_check
          %p1038 = pneg %p146
        $region80: #{tpu_custom_call.1} parent=77 // pred_check_branch
          %1040 = sbr.rel (%p1038) target = $region82
        $region81: #{tpu_custom_call.1} parent=77 // pred_region
          %s1041 = sand.u32 %s131, 1
          %s1042 = scalar_lea.sflag [#allocation5], %s1041
          %s1043 = sand.u32 %s131, 1
          %s1044 = smul.addr %s1043, 16
          %s1045 = scalar_lea.vmem [#allocation4], %s1044
          %1046 = dma.done %s1042, 256
        $region82: #{tpu_custom_call.1} parent=77 // pred_fallthru
          _
      $region78: #{tpu_custom_call.1} parent=5 // pred_fallthru
        _
    $region6: #{tpu_custom_call.1} parent=1 // loop_footer
      %s18 = sadd.s32 1, %s14
    $region7: #{tpu_custom_call.1} parent=1 // loop_footer_branch
      %13 = sbr.rel target = $region3
    $region8: #{tpu_custom_call.1} parent=1 // loop_exit
      _
    %1047 = vsyncpa [#allocation5], 1
    %s1048 = scalar_lea.sflag [#allocation5], 1
    %1049 = vsyncpa %s1048, 1
  %1050 = vsyncmov [#allocation3]
  %s1051 = vpop.sfrf %1050
  %p1052 = scmp.eq.s32.totalorder %s1051, 0
  %p1053 = pneg %p1052
  %1055 = shalt.err (%p1053)
  %s1056 = scalar_lea.sflag [#allocation3], 1
  %1057 = vsyncmov %s1056
  %s1058 = vpop.sfrf %1057
  %p1059 = scmp.eq.s32.totalorder %s1058, 0
  %p1060 = pneg %p1059
  %1062 = shalt.err (%p1060)

</llo_original>
